<compile_context>
chip_gen: v5e
topology: v5e:2x2
jax: 0.10.0
libtpu: 0.0.40
codegen_flags: <defaults>
</compile_context>

<pallas_src>
import jax
import jax.numpy as jnp
from jax.experimental import pallas as pl
from jax.experimental.pallas import tpu as pltpu

RMS_EPS = 1e-5


def _lm_head_kernel(x_ref, g_ref, w_ref, tok_ref, xn_ref, mval_ref, midx_ref):
    """Grid = (row blocks [parallel], vocab tiles [arbitrary reduction])."""
    j = pl.program_id(1)
    tv = w_ref.shape[0]  # vocab tile size

    # --- first vocab tile for this row block: RMSNorm once, init accumulators ---
    @pl.when(j == 0)
    def _():
        x = x_ref[...].astype(jnp.float32)
        var = jnp.mean(x * x, axis=-1, keepdims=True)
        xn = x * jax.lax.rsqrt(var + RMS_EPS)
        xn_ref[...] = (xn * g_ref[...].astype(jnp.float32)).astype(xn_ref.dtype)
        mval_ref[...] = jnp.full(mval_ref.shape, -jnp.inf, dtype=mval_ref.dtype)
        midx_ref[...] = jnp.zeros(midx_ref.shape, dtype=midx_ref.dtype)

    # --- logits for this vocab tile: contract on H, bf16 x bf16 -> f32 on MXU ---
    logits = jax.lax.dot_general(
        xn_ref[...], w_ref[...],
        dimension_numbers=(((1,), (1,)), ((), ())),
        preferred_element_type=jnp.float32,
    )  # [rows, tv]

    # --- running argmax (first occurrence wins, matching topk/argmax ties) ---
    tile_max = jnp.max(logits, axis=-1, keepdims=True)                  # [rows, 1]
    lane_idx = jax.lax.broadcasted_iota(jnp.int32, logits.shape, 1)      # [rows, tv]
    masked = jnp.where(logits == tile_max, lane_idx, jnp.iinfo(jnp.int32).max)
    tile_arg = jnp.min(masked, axis=-1, keepdims=True) + j * tv          # [rows, 1]

    better = tile_max > mval_ref[...]
    midx_ref[...] = jnp.where(better, tile_arg, midx_ref[...])
    mval_ref[...] = jnp.where(better, tile_max, mval_ref[...])

    # --- last vocab tile: emit tokens for this row block ---
    @pl.when(j == pl.num_programs(1) - 1)
    def _():
        tok_ref[...] = midx_ref[...]


def lm_head_forward(hidden_states, norm_weight, lm_head_weight, *,
                    row_block=256, vocab_tile=1024):
    """hidden_states: [B, S, H]; norm_weight: [H]; lm_head_weight: [V, H].
    Pass lm_head_weight as bf16 to halve HBM traffic (kernel is BW-bound).
    Returns token indices [B, S, 1] (int32)."""
    B, S, H = hidden_states.shape
    V, H2 = lm_head_weight.shape
    assert H2 == H

    N = B * S
    x2d = hidden_states.reshape(N, H)
    g2d = norm_weight.reshape(1, H)

    # --- tile sizing (clamped to problem size / alignment) ---
    row_block = min(row_block, N)
    if row_block < N and row_block % 8 != 0:
        row_block = max(8, (row_block // 8) * 8)
    n_pad = ((N + row_block - 1) // row_block) * row_block
    if n_pad != N:
        x2d = jnp.pad(x2d, ((0, n_pad - N), (0, 0)))  # zero rows -> argmax 0, harmless

    vocab_tile = min(vocab_tile, V)
    if V % vocab_tile != 0:
        vocab_tile = next(
            (t for t in range(min(vocab_tile, V), 0, -1)
             if V % t == 0 and (t % 128 == 0 or t == V)), V)

    grid = (n_pad // row_block, V // vocab_tile)

    # --- VMEM budget: estimate + headroom (fits v7x 64 MiB with defaults) ---
    x_bytes = jnp.dtype(x2d.dtype).itemsize
    w_bytes = jnp.dtype(lm_head_weight.dtype).itemsize
    g_bytes = jnp.dtype(g2d.dtype).itemsize
    vmem_est = (2 * row_block * H * x_bytes      # x block, double-buffered
                + 2 * H * g_bytes                # gamma
                + 2 * vocab_tile * H * w_bytes   # W tile, double-buffered
                + 2 * row_block * 4              # token output
                + row_block * H * 2              # xn scratch (bf16)
                + 2 * row_block * 4)             # mval + midx scratch
    vmem_limit = min(max(int(vmem_est * 1.5), 16 * 1024 * 1024), 96 * 1024 * 1024)

    tokens = pl.pallas_call(
        _lm_head_kernel,
        out_shape=jax.ShapeDtypeStruct((n_pad, 1), jnp.int32),
        grid_spec=pltpu.PrefetchScalarGridSpec(
            num_scalar_prefetch=0,
            grid=grid,
            in_specs=[
                pl.BlockSpec((row_block, H), lambda i, j: (i, 0)),    # x row block
                pl.BlockSpec((1, H), lambda i, j: (0, 0)),            # gamma
                pl.BlockSpec((vocab_tile, H), lambda i, j: (j, 0)),   # W vocab tile
            ],
            out_specs=pl.BlockSpec((row_block, 1), lambda i, j: (i, 0)),
            scratch_shapes=[
                pltpu.VMEM((row_block, H), jnp.bfloat16),   # normalized hidden (bf16)
                pltpu.VMEM((row_block, 1), jnp.float32),    # running max logit
                pltpu.VMEM((row_block, 1), jnp.int32),      # running argmax
            ],
        ),
        compiler_params=pltpu.CompilerParams(
            dimension_semantics=("parallel", "arbitrary"),
            vmem_limit_bytes=vmem_limit,
        ),
    )(x2d, g2d, lm_head_weight)

    # TODO(synk): torch.topk returns int64 indices; int32 used here (TPU-native).
    return tokens[:N].reshape(B, S, 1)


def _reference(hidden_states, norm_weight, lm_head_weight):
    """Mirrors the kernel's precision path (f32 RMSNorm, bf16 matmul inputs,
    f32 accumulation) so argmax matches exactly."""
    B, S, H = hidden_states.shape
    x = hidden_states.reshape(B * S, H).astype(jnp.float32)
    var = jnp.mean(x * x, axis=-1, keepdims=True)
    xn = (x * jax.lax.rsqrt(var + RMS_EPS)
          * norm_weight.astype(jnp.float32)).astype(jnp.bfloat16)
    logits = jax.lax.dot_general(
        xn, lm_head_weight.astype(jnp.bfloat16),
        dimension_numbers=(((1,), (1,)), ((), ())),
        preferred_element_type=jnp.float32)
    tok = jnp.argmax(logits, axis=-1, keepdims=True).astype(jnp.int32)
    return tok.reshape(B, S, 1)


if __name__ == "__main__":
    B, S, H, V = 2, 4, 32, 256  # small synthetic shapes (N = B*S = 8 rows)

    key = jax.random.PRNGKey(0)
    k_x, k_g, k_w = jax.random.split(key, 3)

    hidden_states = jax.random.normal(k_x, (B, S, H), dtype=jnp.float32)
    norm_weight = 1.0 + 0.01 * jax.random.normal(k_g, (H,), dtype=jnp.float32)
    # Weight kept in bf16 in HBM (the bandwidth win for this kernel).
    lm_head_weight = (jax.random.normal(k_w, (V, H), dtype=jnp.float32) * 0.05
                      ).astype(jnp.bfloat16)

    tokens = lm_head_forward(hidden_states, norm_weight, lm_head_weight)
    tokens = jax.block_until_ready(tokens)

    ref = _reference(hidden_states, norm_weight, lm_head_weight)
    assert tokens.shape == (B, S, 1), tokens.shape
    assert jnp.array_equal(tokens, ref), (tokens, ref)

    print("KERNEL_OK")
</pallas_src>

<mosaic_0001>
module attributes {stable_mosaic.version = 11 : i64} {
  func.func @_lm_head_kernel(%arg0: i32, %arg1: i32, %arg2: memref<8x32xf32, #tpu.memory_space<vmem>>, %arg3: memref<1x32xf32, #tpu.memory_space<vmem>>, %arg4: memref<256x32xbf16, #tpu.memory_space<vmem>>, %arg5: memref<8x1xi32, #tpu.memory_space<vmem>>, %arg6: memref<8x32xbf16, #tpu.memory_space<vmem>>, %arg7: memref<8x1xf32, #tpu.memory_space<vmem>>, %arg8: memref<8x1xi32, #tpu.memory_space<vmem>>) attributes {dimension_semantics = [#tpu.dimension_semantics<parallel>, #tpu.dimension_semantics<arbitrary>], iteration_bounds = array<i64: 1, 1>, scalar_prefetch = 0 : i64, scratch_operands = 3 : i64, tpu.core_type = #tpu.core_type<tc>, window_params = [{transform_indices = @transform_0, window_bounds = array<i64: 8, 32>}, {pipeline_mode = #tpu.pipeline_mode<synchronous>, transform_indices = @transform_1, window_bounds = array<i64: 1, 32>}, {transform_indices = @transform_2, window_bounds = array<i64: 256, 32>}, {transform_indices = @transform_3, window_bounds = array<i64: 8, 1>}]} {
    %c0_i32 = arith.constant 0 : i32
    %0 = arith.cmpi eq, %arg1, %c0_i32 : i32
    %1 = arith.extui %0 : i1 to i32
    %c0_i32_0 = arith.constant 0 : i32
    %2 = arith.cmpi ne, %1, %c0_i32_0 : i32
    scf.if %2 {
      %c0_18 = arith.constant 0 : index
      %c0_19 = arith.constant 0 : index
      %29 = vector.load %arg2[%c0_18, %c0_19] : memref<8x32xf32, #tpu.memory_space<vmem>>, vector<8x32xf32>
      %30 = arith.mulf %29, %29 : vector<8x32xf32>
      %cst_20 = arith.constant dense<0.000000e+00> : vector<8xf32>
      %31 = vector.multi_reduction <add>, %30, %cst_20 [1] : vector<8x32xf32> to vector<8xf32>
      %32 = vector.shape_cast %31 : vector<8xf32> to vector<8x1xf32>
      %cst_21 = arith.constant 3.200000e+01 : f32
      %33 = vector.broadcast %cst_21 : f32 to vector<8x1xf32>
      %34 = arith.divf %32, %33 : vector<8x1xf32>
      %cst_22 = arith.constant 9.99999974E-6 : f32
      %35 = vector.broadcast %cst_22 : f32 to vector<8x1xf32>
      %36 = arith.addf %34, %35 : vector<8x1xf32>
      %37 = math.rsqrt %36 : vector<8x1xf32>
      %38 = vector.broadcast %37 : vector<8x1xf32> to vector<8x32xf32>
      %39 = arith.mulf %29, %38 : vector<8x32xf32>
      %c0_23 = arith.constant 0 : index
      %c0_24 = arith.constant 0 : index
      %40 = vector.load %arg3[%c0_23, %c0_24] : memref<1x32xf32, #tpu.memory_space<vmem>>, vector<1x32xf32>
      %41 = vector.broadcast %40 : vector<1x32xf32> to vector<8x32xf32>
      %42 = arith.mulf %39, %41 : vector<8x32xf32>
      %43 = arith.truncf %42 : vector<8x32xf32> to vector<8x32xbf16>
      %c0_25 = arith.constant 0 : index
      %c0_26 = arith.constant 0 : index
      %44 = vector.load %arg6[%c0_25, %c0_26] : memref<8x32xbf16, #tpu.memory_space<vmem>>, vector<8x32xbf16>
      tpu.vector_store %arg6[%c0_25, %c0_26], %43 {strides = array<i32>} : memref<8x32xbf16, #tpu.memory_space<vmem>>, vector<8x32xbf16>,
      %cst_27 = arith.constant 0xFF800000 : f32
      %45 = vector.broadcast %cst_27 : f32 to vector<8x1xf32>
      %c0_28 = arith.constant 0 : index
      %c0_29 = arith.constant 0 : index
      %46 = vector.load %arg7[%c0_28, %c0_29] : memref<8x1xf32, #tpu.memory_space<vmem>>, vector<8x1xf32>
      tpu.vector_store %arg7[%c0_28, %c0_29], %45 {strides = array<i32>} : memref<8x1xf32, #tpu.memory_space<vmem>>, vector<8x1xf32>,
      %c0_i32_30 = arith.constant 0 : i32
      %47 = vector.broadcast %c0_i32_30 : i32 to vector<8x1xi32>
      %c0_31 = arith.constant 0 : index
      %c0_32 = arith.constant 0 : index
      %48 = vector.load %arg8[%c0_31, %c0_32] : memref<8x1xi32, #tpu.memory_space<vmem>>, vector<8x1xi32>
      tpu.vector_store %arg8[%c0_31, %c0_32], %47 {strides = array<i32>} : memref<8x1xi32, #tpu.memory_space<vmem>>, vector<8x1xi32>,
    } else {
    }
    %c0 = arith.constant 0 : index
    %c0_1 = arith.constant 0 : index
    %3 = vector.load %arg6[%c0, %c0_1] : memref<8x32xbf16, #tpu.memory_space<vmem>>, vector<8x32xbf16>
    %c0_2 = arith.constant 0 : index
    %c0_3 = arith.constant 0 : index
    %4 = vector.load %arg4[%c0_2, %c0_3] : memref<256x32xbf16, #tpu.memory_space<vmem>>, vector<256x32xbf16>
    %cst = arith.constant dense<0.000000e+00> : vector<8x256xf32>
    %5 = tpu.matmul %3, %4, %cst {dimension_numbers = #tpu.dot_dimension_numbers<[1], [1], [0], [0], [0, 0, 1, 0], [], []>} : vector<8x32xbf16>, vector<256x32xbf16>, vector<8x256xf32> -> vector<8x256xf32>
    %cst_4 = arith.constant dense<0xFF800000> : vector<8xf32>
    %6 = vector.multi_reduction <maximumf>, %5, %cst_4 [1] : vector<8x256xf32> to vector<8xf32>
    %7 = vector.shape_cast %6 : vector<8xf32> to vector<8x1xf32>
    %8 = tpu.iota {dimensions = array<i32: 1>} : vector<8x256xi32>
    %9 = vector.broadcast %7 : vector<8x1xf32> to vector<8x256xf32>
    %10 = arith.cmpf oeq, %5, %9 : vector<8x256xf32>
    %c2147483647_i32 = arith.constant 2147483647 : i32
    %11 = vector.broadcast %c2147483647_i32 : i32 to vector<8x256xi32>
    %12 = arith.select %10, %8, %11 : vector<8x256xi1>, vector<8x256xi32>
    %cst_5 = arith.constant dense<2147483647> : vector<8xi32>
    %13 = vector.multi_reduction <minsi>, %12, %cst_5 [1] : vector<8x256xi32> to vector<8xi32>
    %14 = vector.shape_cast %13 : vector<8xi32> to vector<8x1xi32>
    %c256_i32 = arith.constant 256 : i32
    %15 = arith.muli %arg1, %c256_i32 : i32
    %16 = vector.broadcast %15 : i32 to vector<8x1xi32>
    %17 = arith.addi %14, %16 : vector<8x1xi32>
    %c0_6 = arith.constant 0 : index
    %c0_7 = arith.constant 0 : index
    %18 = vector.load %arg7[%c0_6, %c0_7] : memref<8x1xf32, #tpu.memory_space<vmem>>, vector<8x1xf32>
    %19 = arith.cmpf ogt, %7, %18 : vector<8x1xf32>
    %c0_8 = arith.constant 0 : index
    %c0_9 = arith.constant 0 : index
    %20 = vector.load %arg8[%c0_8, %c0_9] : memref<8x1xi32, #tpu.memory_space<vmem>>, vector<8x1xi32>
    %21 = arith.select %19, %17, %20 : vector<8x1xi1>, vector<8x1xi32>
    %c0_10 = arith.constant 0 : index
    %c0_11 = arith.constant 0 : index
    %22 = vector.load %arg8[%c0_10, %c0_11] : memref<8x1xi32, #tpu.memory_space<vmem>>, vector<8x1xi32>
    tpu.vector_store %arg8[%c0_10, %c0_11], %21 {strides = array<i32>} : memref<8x1xi32, #tpu.memory_space<vmem>>, vector<8x1xi32>,
    %c0_12 = arith.constant 0 : index
    %c0_13 = arith.constant 0 : index
    %23 = vector.load %arg7[%c0_12, %c0_13] : memref<8x1xf32, #tpu.memory_space<vmem>>, vector<8x1xf32>
    %24 = arith.select %19, %7, %23 : vector<8x1xi1>, vector<8x1xf32>
    %c0_14 = arith.constant 0 : index
    %c0_15 = arith.constant 0 : index
    %25 = vector.load %arg7[%c0_14, %c0_15] : memref<8x1xf32, #tpu.memory_space<vmem>>, vector<8x1xf32>
    tpu.vector_store %arg7[%c0_14, %c0_15], %24 {strides = array<i32>} : memref<8x1xf32, #tpu.memory_space<vmem>>, vector<8x1xf32>,
    %c0_i32_16 = arith.constant 0 : i32
    %26 = arith.cmpi eq, %arg1, %c0_i32_16 : i32
    %27 = arith.extui %26 : i1 to i32
    %c0_i32_17 = arith.constant 0 : i32
    %28 = arith.cmpi ne, %27, %c0_i32_17 : i32
    scf.if %28 {
      %c0_18 = arith.constant 0 : index
      %c0_19 = arith.constant 0 : index
      %29 = vector.load %arg8[%c0_18, %c0_19] : memref<8x1xi32, #tpu.memory_space<vmem>>, vector<8x1xi32>
      %c0_20 = arith.constant 0 : index
      %c0_21 = arith.constant 0 : index
      %30 = vector.load %arg5[%c0_20, %c0_21] : memref<8x1xi32, #tpu.memory_space<vmem>>, vector<8x1xi32>
      tpu.vector_store %arg5[%c0_20, %c0_21], %29 {strides = array<i32>} : memref<8x1xi32, #tpu.memory_space<vmem>>, vector<8x1xi32>,
    } else {
    }
    return
  }
  func.func @transform_0(%arg0: i32, %arg1: i32) -> (i32, i32) {
    %c0_i32 = arith.constant 0 : i32
    %c0_i32_0 = arith.constant 0 : i32
    return %arg0, %c0_i32 : i32, i32
  }
  func.func @transform_1(%arg0: i32, %arg1: i32) -> (i32, i32) {
    %c0_i32 = arith.constant 0 : i32
    %c0_i32_0 = arith.constant 0 : i32
    %c0_i32_1 = arith.constant 0 : i32
    return %c0_i32, %c0_i32_0 : i32, i32
  }
  func.func @transform_2(%arg0: i32, %arg1: i32) -> (i32, i32) {
    %c0_i32 = arith.constant 0 : i32
    %c0_i32_0 = arith.constant 0 : i32
    return %arg1, %c0_i32 : i32, i32
  }
  func.func @transform_3(%arg0: i32, %arg1: i32) -> (i32, i32) {
    %c0_i32 = arith.constant 0 : i32
    %c0_i32_0 = arith.constant 0 : i32
    return %arg0, %c0_i32 : i32, i32
  }
}

</mosaic_0001>

<llo_original>
// kernel: tpu_custom_call.1
$region0: #{tpu_custom_call.1}
  #allocation0 [shape = 'u32[]', space=smem, size = 0x4, offset = 0x4, fixed_abs, tag = 'smem constant byte address 0x4 - core index']
  #allocation1 [shape = 'u32[72,128]{1,0:T(1,128)}', space=vmem, size = 0x9000, scoped, tag = 'internal scratch']
  #allocation2 [shape = 'bf16[8,32]{1,0:T(8,128)(2,1)}', space=vmem, size = 0x800, scoped, tag = 'scratch operand']
  #allocation3 [shape = 'f32[8,1]{1,0:T(8,128)}', space=vmem, size = 0x1000, scoped, tag = 'scratch operand']
  #allocation4 [shape = 's32[8,1]{1,0:T(8,128)}', space=vmem, size = 0x1000, scoped, tag = 'scratch operand']
  %s0 = inlined_call_operand.vmem [shape: f32[8,32], index: 0, kind: input, shape index: {}]
  %s1 = inlined_call_operand.vmem [shape: f32[1,32], index: 1, kind: input, shape index: {}]
  %s2 = inlined_call_operand.vmem [shape: bf16[256,32], index: 2, kind: input, shape index: {}]
  %s3 = inlined_call_operand.vmem [shape: s32[8,1], index: 3, kind: output, shape index: {}]
  %s4 = sld [smem:[#allocation0]]
  $region30: #{tpu_custom_call.1} parent=0
    _
  %s6 = ssub.s32 1, %s4
  %s7 = scalar_select 0, %s6, %s4
  // Predicated region
  $region2: #{tpu_custom_call.1} parent=0 // pred_check
    _
  $region3: #{tpu_custom_call.1} parent=0 // pred_check_branch
    %9 = sbr.rel (0) target = $region5
  $region4: #{tpu_custom_call.1} parent=0 // pred_region
    _
  $region5: #{tpu_custom_call.1} parent=0 // pred_fallthru
    _
  // Predicated region
  $region6: #{tpu_custom_call.1} parent=0 // pred_check
    _
  $region7: #{tpu_custom_call.1} parent=0 // pred_check_branch
    %11 = sbr.rel (0) target = $region9
  $region8: #{tpu_custom_call.1} parent=0 // pred_region
    _
  $region9: #{tpu_custom_call.1} parent=0 // pred_fallthru
    _
  // Predicated region
  $region10: #{tpu_custom_call.1} parent=0 // pred_check
    _
  $region11: #{tpu_custom_call.1} parent=0 // pred_check_branch
    %13 = sbr.rel (0) target = $region13
  $region12: #{tpu_custom_call.1} parent=0 // pred_region
    _
  $region13: #{tpu_custom_call.1} parent=0 // pred_fallthru
    _
  %p14 = scmp.eq.s32.totalorder 0, 0
  // Predicated region
  $region14: #{tpu_custom_call.1} parent=0 // pred_check
    %p15 = pneg %p14
  $region15: #{tpu_custom_call.1} parent=0 // pred_check_branch
    %17 = sbr.rel (%p15) target = $region17
  $region16: #{tpu_custom_call.1} parent=0 // pred_region
    %v18 = vld [vmem:[%s0] sm:$0xff]
    %v19 = vmul.f32 %v18, %v18
    %vm20 = vcmask 261120
    %v21 = vsel %vm20, %v19, 0.0
    %22 = vadd.xlane.f32.xlu0 %v21
    %v23 = vpop.xlane.xlu0 %22
    %v24 = vrcp.pop 32.0
    %v25 = vmul.f32 32.0, %v24
    %v26 = vsub.f32 1.0, %v25
    %v27 = vmul.f32 %v24, %v26
    %v28 = vadd.f32 %v24, %v27
    %vm29 = vweird.f32 %v24
    %v30 = vsel %vm29, %v24, %v28
    %v31 = vmul.f32 %v23, %v30
    %v32 = vadd.f32 %v31, 1e-05
    %v33 = vrsqrt.pop %v32
    %v34 = vmul.f32 %v33, %v32
    %v35 = vmul.f32 %v34, %v33
    %v36 = vmul.f32 0.5, %v35
    %v37 = vsub.f32 1.5, %v36
    %v38 = vmul.f32 %v33, %v37
    %vm39 = vweird.f32 %v32
    %vm40 = vweird.f32 %v33
    %vm41 = vmor %vm39, %vm40
    %v42 = vsel %vm41, %v33, %v38
    %v43 = vmul.f32 %v18, %v42
    %v44 = vld [vmem:[%s1] sm:$0x1]
    %v46 = vperm.slane %v44, 0
    %v48 = vmul.f32 %v43, %v46
    %v49 = vpack.c.bf16 %v48, %v48
    %vm50 = vcmask 257024
    %51 = vst.msk [vmem:[#allocation2] sm:$0xf] %vm50, %v49
    %vm52 = vcmask 7168
    %53 = vst.msk [vmem:[#allocation3] sm:$0xff] %vm52, -inf
    %54 = vst.msk [vmem:[#allocation4] sm:$0xff] %vm52, 0
  $region17: #{tpu_custom_call.1} parent=0 // pred_fallthru
    _
  %v55 = vld [vmem:[#allocation2] sm:$0xf]
  %v56 = vld [vmem:[%s2] sm:$0xf]
  %v57 = vld [vmem:[%s2 + $0x4] sm:$0xf]
  %v58 = vld [vmem:[%s2 + $0x8] sm:$0xf]
  %v59 = vld [vmem:[%s2 + $0xc] sm:$0xf]
  %v60 = vld [vmem:[%s2 + $0x10] sm:$0xf]
  %v61 = vld [vmem:[%s2 + $0x14] sm:$0xf]
  %v62 = vld [vmem:[%s2 + $0x18] sm:$0xf]
  %v63 = vld [vmem:[%s2 + $0x1c] sm:$0xf]
  %v64 = vld [vmem:[%s2 + $0x20] sm:$0xf]
  %v65 = vld [vmem:[%s2 + $0x24] sm:$0xf]
  %v66 = vld [vmem:[%s2 + $0x28] sm:$0xf]
  %v67 = vld [vmem:[%s2 + $0x2c] sm:$0xf]
  %v68 = vld [vmem:[%s2 + $0x30] sm:$0xf]
  %v69 = vld [vmem:[%s2 + $0x34] sm:$0xf]
  %v70 = vld [vmem:[%s2 + $0x38] sm:$0xf]
  %v71 = vld [vmem:[%s2 + $0x3c] sm:$0xf]
  %v72 = vld [vmem:[%s2 + $0x40] sm:$0xf]
  %v73 = vld [vmem:[%s2 + $0x44] sm:$0xf]
  %v74 = vld [vmem:[%s2 + $0x48] sm:$0xf]
  %v75 = vld [vmem:[%s2 + $0x4c] sm:$0xf]
  %v76 = vld [vmem:[%s2 + $0x50] sm:$0xf]
  %v77 = vld [vmem:[%s2 + $0x54] sm:$0xf]
  %v78 = vld [vmem:[%s2 + $0x58] sm:$0xf]
  %v79 = vld [vmem:[%s2 + $0x5c] sm:$0xf]
  %v80 = vld [vmem:[%s2 + $0x60] sm:$0xf]
  %v81 = vld [vmem:[%s2 + $0x64] sm:$0xf]
  %v82 = vld [vmem:[%s2 + $0x68] sm:$0xf]
  %v83 = vld [vmem:[%s2 + $0x6c] sm:$0xf]
  %v84 = vld [vmem:[%s2 + $0x70] sm:$0xf]
  %v85 = vld [vmem:[%s2 + $0x74] sm:$0xf]
  %v86 = vld [vmem:[%s2 + $0x78] sm:$0xf]
  %v87 = vld [vmem:[%s2 + $0x7c] sm:$0xf]
  %v120 = vunpack.c.l.b16 %v56
  %v121 = vunpack.c.l.b16 %v57
  %v122 = vunpack.c.l.b16 %v58
  %v123 = vunpack.c.l.b16 %v59
  %v124 = vunpack.c.l.b16 %v60
  %v125 = vunpack.c.l.b16 %v61
  %v126 = vunpack.c.l.b16 %v62
  %v127 = vunpack.c.l.b16 %v63
  %v128 = vunpack.c.l.b16 %v64
  %v129 = vunpack.c.l.b16 %v65
  %v130 = vunpack.c.l.b16 %v66
  %v131 = vunpack.c.l.b16 %v67
  %v132 = vunpack.c.l.b16 %v68
  %v133 = vunpack.c.l.b16 %v69
  %v134 = vunpack.c.l.b16 %v70
  %v135 = vunpack.c.l.b16 %v71
  %v136 = vunpack.c.l.b16 %v72
  %v137 = vunpack.c.l.b16 %v73
  %v138 = vunpack.c.l.b16 %v74
  %v139 = vunpack.c.l.b16 %v75
  %v140 = vunpack.c.l.b16 %v76
  %v141 = vunpack.c.l.b16 %v77
  %v142 = vunpack.c.l.b16 %v78
  %v143 = vunpack.c.l.b16 %v79
  %v144 = vunpack.c.l.b16 %v80
  %v145 = vunpack.c.l.b16 %v81
  %v146 = vunpack.c.l.b16 %v82
  %v147 = vunpack.c.l.b16 %v83
  %v148 = vunpack.c.l.b16 %v84
  %v149 = vunpack.c.l.b16 %v85
  %v150 = vunpack.c.l.b16 %v86
  %v151 = vunpack.c.l.b16 %v87
  %v152 = vpack.c.b16 %v121, %v120
  %v153 = vpack.c.b16 %v123, %v122
  %v154 = vpack.c.b16 %v125, %v124
  %v155 = vpack.c.b16 %v127, %v126
  %v156 = vpack.c.b16 %v129, %v128
  %v157 = vpack.c.b16 %v131, %v130
  %v158 = vpack.c.b16 %v133, %v132
  %v159 = vpack.c.b16 %v135, %v134
  %v160 = vpack.c.b16 %v137, %v136
  %v161 = vpack.c.b16 %v139, %v138
  %v162 = vpack.c.b16 %v141, %v140
  %v163 = vpack.c.b16 %v143, %v142
  %v164 = vpack.c.b16 %v145, %v144
  %v165 = vpack.c.b16 %v147, %v146
  %v166 = vpack.c.b16 %v149, %v148
  %v167 = vpack.c.b16 %v151, %v150
  %vm168 = vcmask 261120
  %v170 = vsel %vm168, %v55, 0
  %v173 = vsel %vm168, %v152, 0
  %v176 = vsel %vm168, %v153, 0
  %v179 = vsel %vm168, %v154, 0
  %v182 = vsel %vm168, %v155, 0
  %v185 = vsel %vm168, %v156, 0
  %v188 = vsel %vm168, %v157, 0
  %v191 = vsel %vm168, %v158, 0
  %v194 = vsel %vm168, %v159, 0
  %v197 = vsel %vm168, %v160, 0
  %v200 = vsel %vm168, %v161, 0
  %v203 = vsel %vm168, %v162, 0
  %v206 = vsel %vm168, %v163, 0
  %v209 = vsel %vm168, %v164, 0
  %v212 = vsel %vm168, %v165, 0
  %v215 = vsel %vm168, %v166, 0
  %v218 = vsel %vm168, %v167, 0
  %220 = vmatpush.bf16.xpose.msra.mxu0 %v194
  %221 = vmatpush.bf16.xpose.msra.mxu0 %v191
  %222 = vmatpush.bf16.xpose.msra.mxu0 %v188
  %223 = vmatpush.bf16.xpose.msra.mxu0 %v185
  %224 = vmatpush.bf16.xpose.msra.mxu0 %v182
  %225 = vmatpush.bf16.xpose.msra.mxu0 %v179
  %226 = vmatpush.bf16.xpose.msra.mxu0 %v176
  %227 = vmatpush.bf16.xpose.msra.mxu0 %v173
  %228 = vmatmul.bf16.gmra.mxu0 %v170
  %v229 = vpop.f32.mrf.mxu0
  %v230 = vadd.f32 0.0, %v229
  %v231 = vpop.f32.mrf.mxu0
  %232 = vdwg.mxu0
  %233 = vmatpush.bf16.xpose.msra.mxu0 %v218
  %234 = vmatpush.bf16.xpose.msra.mxu0 %v215
  %235 = vmatpush.bf16.xpose.msra.mxu0 %v212
  %236 = vmatpush.bf16.xpose.msra.mxu0 %v209
  %237 = vmatpush.bf16.xpose.msra.mxu0 %v206
  %238 = vmatpush.bf16.xpose.msra.mxu0 %v203
  %239 = vmatpush.bf16.xpose.msra.mxu0 %v200
  %240 = vmatpush.bf16.xpose.msra.mxu0 %v197
  %241 = vmatmul.bf16.gmra.mxu0 %v170
  %v242 = vpop.f32.mrf.mxu0
  %v243 = vadd.f32 0.0, %v242
  %v244 = vpop.f32.mrf.mxu0
  %245 = vdwg.mxu0
  %v246 = vmax.f32 %v230, %v243
  %247 = vmax.xlane.f32.xlu0 %v246
  %v248 = vpop.xlane.xlu0 %247
  %v249 = vlaneseq
  %v250 = vand.u32 %v249, 127
  %v251 = vadd.s32 %v250, 128
  %vm252 = vcmp.eq.f32.partialorder %v230, %v248
  %vm253 = vcmp.eq.f32.partialorder %v243, %v248
  %v254 = vsel %vm252, %v250, 2147483647
  %v255 = vsel %vm253, %v251, 2147483647
  %vm256 = vcmp.lt.s32.totalorder %v254, %v255
  %v257 = vsel %vm256, %v254, %v255
  %v258 = vand.u32 %v257, 65535
  %v259 = vshra.s32 %v257, 16
  %v260 = vcvt.s32.f32 %v258
  %v261 = vcvt.s32.f32 %v259
  %262 = vmin.xlane.f32.xlu0 %v261
  %v263 = vpop.xlane.xlu0 %262
  %vm264 = vcmp.eq.f32.partialorder %v261, %v263
  %v265 = vsel %vm264, %v260, inf
  %266 = vmin.xlane.f32.xlu0 %v265
  %v267 = vpop.xlane.xlu0 %266
  %v268 = vcvt.f32.s32 %v267
  %v269 = vcvt.f32.s32 %v263
  %v270 = vshll.u32 %v269, 16
  %v271 = vadd.s32 %v270, %v268
  %s272 = smul.u32 0, 256
  %v273 = vstv %s272
  %v274 = vadd.s32 %v271, %v273
  %v275 = vld [vmem:[#allocation3] sm:$0xff]
  %vm276 = vcmp.gt.f32.partialorder %v248, %v275
  %v277 = vld [vmem:[#allocation4] sm:$0xff]
  %v278 = vsel %vm276, %v274, %v277
  %vm279 = vcmask 7168
  %280 = vst.msk [vmem:[#allocation4] sm:$0xff] %vm279, %v278
  %v281 = vld [vmem:[#allocation3] sm:$0xff]
  %v282 = vsel %vm276, %v248, %v281
  %283 = vst.msk [vmem:[#allocation3] sm:$0xff] %vm279, %v282
  // Predicated region
  $region18: #{tpu_custom_call.1} parent=0 // pred_check
    %p284 = pneg %p14
  $region19: #{tpu_custom_call.1} parent=0 // pred_check_branch
    %286 = sbr.rel (%p284) target = $region21
  $region20: #{tpu_custom_call.1} parent=0 // pred_region
    %v287 = vld [vmem:[#allocation4] sm:$0xff]
    %288 = vst.msk [vmem:[%s3] sm:$0xff] %vm279, %v287
  $region21: #{tpu_custom_call.1} parent=0 // pred_fallthru
    _
  // Predicated region
  $region22: #{tpu_custom_call.1} parent=0 // pred_check
    _
  $region23: #{tpu_custom_call.1} parent=0 // pred_check_branch
    %290 = sbr.rel (0) target = $region25
  $region24: #{tpu_custom_call.1} parent=0 // pred_region
    _
  $region25: #{tpu_custom_call.1} parent=0 // pred_fallthru
    _
  // Predicated region
  $region26: #{tpu_custom_call.1} parent=0 // pred_check
    _
  $region27: #{tpu_custom_call.1} parent=0 // pred_check_branch
    %292 = sbr.rel (0) target = $region29
  $region28: #{tpu_custom_call.1} parent=0 // pred_region
    _
  $region29: #{tpu_custom_call.1} parent=0 // pred_fallthru
    _

</llo_original>
